<compile_context>
chip_gen: v5e
topology: v5e:2x2
jax: 0.10.0
libtpu: 0.0.40
codegen_flags: <defaults>
</compile_context>

<pallas_src>
import jax
import jax.numpy as jnp
from jax.experimental import pallas as pl
from jax.experimental.pallas import tpu as pltpu


def _round_up(x, m):
    return pl.cdiv(x, m) * m


def _make_word_attention_kernel(s_valid, s_padded):
    """Build the kernel body; s_valid / s_padded are static Python ints."""
    needs_seq_mask = s_padded != s_valid

    def kernel(x_ref, w1t_ref, b1_ref, w2t_ref, o_ref):
        tb, sp, hp = x_ref.shape
        x_raw = x_ref[...]                                   # (TB, Sp, Hp) compute dtype
        # (8,128)-aligned reshape: merging leading dims is layout-free.
        x2d = x_raw.reshape(tb * sp, hp)                     # fills the MXU M dim
        xf = x_raw.astype(jnp.float32)                       # f32 copy for elementwise math

        # Linear(H, H) + tanh  (MXU in compute dtype, f32 accumulation; tanh on EUP).
        t = jnp.tanh(
            jnp.dot(x2d, w1t_ref[...], preferred_element_type=jnp.float32)
            + b1_ref[...]                                    # (1, Hp) broadcasts over rows
        )
        # Linear(H, H, bias=False).
        s = jnp.dot(t.astype(w2t_ref.dtype), w2t_ref[...],
                    preferred_element_type=jnp.float32)
        s = s.reshape(tb, sp, hp)

        if needs_seq_mask:                                   # mask padded seq rows
            seq = jax.lax.broadcasted_iota(jnp.int32, (tb, sp, hp), 1)
            s = jnp.where(seq < s_valid, s, -jnp.inf)

        # Softmax over the sequence axis fused with the weighted sum:
        #   out = sum_s(e * x) / sum_s(e)
        m = jnp.max(s, axis=1, keepdims=True)                # (TB, 1, Hp)
        e = jnp.exp(s - m)                                   # (TB, Sp, Hp); masked rows -> 0
        num = jnp.sum(e * xf, axis=1)                        # (TB, Hp)
        den = jnp.sum(e, axis=1)                             # (TB, Hp)
        o_ref[...] = (num * pl.reciprocal(den, approx=True)).astype(o_ref.dtype)

    return kernel


def word_attention(gru_outputs, w1, b1, w2, *,
                   compute_dtype=jnp.float32, batch_tile=None):
    """gru_outputs: (B, S, H); w1, w2: (H, H) PyTorch (out, in) layout; b1: (H,)."""
    B, S, H = gru_outputs.shape
    out_dtype = gru_outputs.dtype

    # Pad hidden dim to a lane-dense multiple of 128 and seq to a sublane
    # multiple of 8.  Both pads are exact: zero hidden columns produce zero
    # output columns; padded seq rows are masked to -inf inside the kernel.
    Hp = _round_up(H, 128)
    Sp = _round_up(S, 8)

    x = jnp.asarray(gru_outputs)
    w1t = jnp.asarray(w1).T                     # (in, out) so the kernel does x @ W
    w2t = jnp.asarray(w2).T
    b1r = jnp.asarray(b1).reshape(1, H)
    if Hp != H or Sp != S:
        x = jnp.pad(x, ((0, 0), (0, Sp - S), (0, Hp - H)))
        w1t = jnp.pad(w1t, ((0, Hp - H), (0, Hp - H)))
        w2t = jnp.pad(w2t, ((0, Hp - H), (0, Hp - H)))
        b1r = jnp.pad(b1r, ((0, 0), (0, Hp - H)))

    itemsize = jnp.dtype(compute_dtype).itemsize
    if batch_tile is None:
        # TB multiple of 8 so TB*Sp >= ~256 rows (fills v6e/v7x MXU; >=128 for
        # v5e), capped by a VMEM budget that is conservative for v7x's 64 MiB.
        tb = _round_up(max(8, pl.cdiv(256, Sp)), 8)
        budget = 40 * 1024 * 1024
        while tb > 8 and (2 * tb * Sp * Hp * itemsize          # double-buffered x
                          + 5 * tb * Sp * Hp * 4) > budget:    # f32 temporaries
            tb -= 8
        tb = min(tb, _round_up(B, 8))            # don't tile far past the batch
        batch_tile = max(tb, 8)
    TB = batch_tile

    # Pad batch to a multiple of TB (zero rows -> zero outputs, sliced off).
    Bp = _round_up(B, TB)
    if Bp != B:
        x = jnp.pad(x, ((0, Bp - B), (0, 0), (0, 0)))

    x = x.astype(compute_dtype)
    w1t = w1t.astype(compute_dtype)
    w2t = w2t.astype(compute_dtype)
    b1r = b1r.astype(jnp.float32)                # bias added after f32 accumulation

    grid = (Bp // TB,)

    # Explicit VMEM limit: double-buffered x blocks + resident weights + output
    # blocks + in-kernel f32 temporaries, with headroom; clamped below v7x's 64 MiB.
    out_itemsize = jnp.dtype(out_dtype).itemsize
    tile_vmem = (2 * TB * Sp * Hp * itemsize
                 + 2 * 2 * Hp * Hp * itemsize
                 + 2 * TB * Hp * out_itemsize
                 + 6 * TB * Sp * Hp * 4)
    vmem_limit = int(min(max(2 * tile_vmem, 32 * 1024 * 1024), 96 * 1024 * 1024))

    cost = pl.CostEstimate(
        flops=4 * Bp * Sp * Hp * Hp,                        # two (M,K)@(K,N) matmuls
        transcendentals=2 * Bp * Sp * Hp,                   # tanh + exp
        bytes_accessed=int(Bp * Sp * Hp * itemsize          # streamed x
                           + 2 * Hp * Hp * itemsize         # weights
                           + Hp * 4                         # bias
                           + Bp * Hp * out_itemsize),       # output
    )

    out = pl.pallas_call(
        _make_word_attention_kernel(S, Sp),
        out_shape=jax.ShapeDtypeStruct((Bp, Hp), out_dtype),
        grid_spec=pltpu.PrefetchScalarGridSpec(
            num_scalar_prefetch=0,
            grid=grid,
            in_specs=[
                pl.BlockSpec((TB, Sp, Hp), lambda b: (b, 0, 0)),   # x batch tile
                pl.BlockSpec((Hp, Hp), lambda b: (0, 0)),          # W1.T (resident)
                pl.BlockSpec((1, Hp), lambda b: (0, 0)),           # b1 (resident)
                pl.BlockSpec((Hp, Hp), lambda b: (0, 0)),          # W2.T (resident)
            ],
            out_specs=pl.BlockSpec((TB, Hp), lambda b: (b, 0)),    # dense (8k,128k) slab
        ),
        compiler_params=pltpu.CompilerParams(
            dimension_semantics=("parallel",),
            vmem_limit_bytes=vmem_limit,
        ),
        cost_estimate=cost,
    )(x, w1t, b1r, w2t)

    return out[:B, :H]


def word_attention_ref(x, w1, b1, w2):
    t = jnp.tanh(jnp.einsum("bsh,oh->bso", x, w1) + b1)
    s = jnp.einsum("bso,po->bsp", t, w2)
    a = jax.nn.softmax(s, axis=1)
    return jnp.sum(a * x, axis=1)


def _run_case(key, B, S, H):
    kx, kw1, kb1, kw2 = jax.random.split(key, 4)
    x = jax.random.normal(kx, (B, S, H), dtype=jnp.float32)
    bound = 1.0 / (H ** 0.5)
    w1 = jax.random.uniform(kw1, (H, H), jnp.float32, -bound, bound)
    b1 = jax.random.uniform(kb1, (H,), jnp.float32, -bound, bound)
    w2 = jax.random.uniform(kw2, (H, H), jnp.float32, -bound, bound)

    ref = word_attention_ref(x, w1, b1, w2)

    # f32 compute path (exact up to the EUP approximate reciprocal).
    out_f32 = jax.block_until_ready(word_attention(x, w1, b1, w2))
    assert out_f32.shape == (B, H)
    assert jnp.allclose(out_f32, ref, atol=2e-3, rtol=2e-3), \
        f"f32 mismatch vs reference (B={B}, S={S}, H={H})"

    # bf16 MXU-operand path with f32 accumulation (halves HBM traffic for x).
    out_bf16 = jax.block_until_ready(
        word_attention(x, w1, b1, w2, compute_dtype=jnp.bfloat16))
    assert out_bf16.shape == (B, H)
    assert jnp.allclose(out_bf16, ref, atol=1e-1, rtol=1e-1), \
        f"bf16 mismatch vs reference (B={B}, S={S}, H={H})"


if __name__ == "__main__":
    key = jax.random.PRNGKey(0)
    k1, k2 = jax.random.split(key, 2)

    # Aligned seq length (no seq mask path).
    _run_case(k1, B=2, S=8, H=32)
    # Ragged seq length + odd batch: exercises seq -inf masking and batch/H padding.
    _run_case(k2, B=3, S=5, H=32)

    print("KERNEL_OK")
</pallas_src>

<mosaic_0001>
module attributes {stable_mosaic.version = 11 : i64} {
  func.func @kernel(%arg0: i32, %arg1: memref<8x8x128xf32, #tpu.memory_space<vmem>>, %arg2: memref<128x128xf32, #tpu.memory_space<vmem>>, %arg3: memref<1x128xf32, #tpu.memory_space<vmem>>, %arg4: memref<128x128xf32, #tpu.memory_space<vmem>>, %arg5: memref<8x128xf32, #tpu.memory_space<vmem>>) attributes {dimension_semantics = [#tpu.dimension_semantics<parallel>], iteration_bounds = array<i64: 1>, scalar_prefetch = 0 : i64, scratch_operands = 0 : i64, tpu.core_type = #tpu.core_type<tc>, window_params = [{transform_indices = @transform_0, window_bounds = array<i64: 8, 8, 128>}, {pipeline_mode = #tpu.pipeline_mode<synchronous>, transform_indices = @transform_1, window_bounds = array<i64: 128, 128>}, {pipeline_mode = #tpu.pipeline_mode<synchronous>, transform_indices = @transform_2, window_bounds = array<i64: 1, 128>}, {pipeline_mode = #tpu.pipeline_mode<synchronous>, transform_indices = @transform_3, window_bounds = array<i64: 128, 128>}, {transform_indices = @transform_4, window_bounds = array<i64: 8, 128>}]} {
    %c0 = arith.constant 0 : index
    %c0_0 = arith.constant 0 : index
    %c0_1 = arith.constant 0 : index
    %0 = vector.load %arg1[%c0, %c0_0, %c0_1] : memref<8x8x128xf32, #tpu.memory_space<vmem>>, vector<8x8x128xf32>
    %1 = vector.shape_cast %0 : vector<8x8x128xf32> to vector<64x128xf32>
    %c0_2 = arith.constant 0 : index
    %c0_3 = arith.constant 0 : index
    %2 = vector.load %arg2[%c0_2, %c0_3] : memref<128x128xf32, #tpu.memory_space<vmem>>, vector<128x128xf32>
    %cst = arith.constant dense<0.000000e+00> : vector<64x128xf32>
    %3 = tpu.matmul %1, %2, %cst {dimension_numbers = #tpu.dot_dimension_numbers<[1], [0], [0], [1], [0, 0, 1, 1], [], []>} : vector<64x128xf32>, vector<128x128xf32>, vector<64x128xf32> -> vector<64x128xf32>
    %c0_4 = arith.constant 0 : index
    %c0_5 = arith.constant 0 : index
    %4 = vector.load %arg3[%c0_4, %c0_5] : memref<1x128xf32, #tpu.memory_space<vmem>>, vector<1x128xf32>
    %5 = vector.broadcast %4 : vector<1x128xf32> to vector<64x128xf32>
    %6 = arith.addf %3, %5 : vector<64x128xf32>
    %7 = math.tanh %6 : vector<64x128xf32>
    %c0_6 = arith.constant 0 : index
    %c0_7 = arith.constant 0 : index
    %8 = vector.load %arg4[%c0_6, %c0_7] : memref<128x128xf32, #tpu.memory_space<vmem>>, vector<128x128xf32>
    %cst_8 = arith.constant dense<0.000000e+00> : vector<64x128xf32>
    %9 = tpu.matmul %7, %8, %cst_8 {dimension_numbers = #tpu.dot_dimension_numbers<[1], [0], [0], [1], [0, 0, 1, 1], [], []>} : vector<64x128xf32>, vector<128x128xf32>, vector<64x128xf32> -> vector<64x128xf32>
    %10 = vector.shape_cast %9 : vector<64x128xf32> to vector<8x8x128xf32>
    %cst_9 = arith.constant dense<0xFF800000> : vector<8x128xf32>
    %11 = vector.multi_reduction <maximumf>, %10, %cst_9 [1] : vector<8x8x128xf32> to vector<8x128xf32>
    %12 = vector.shape_cast %11 : vector<8x128xf32> to vector<8x1x128xf32>
    %13 = vector.broadcast %12 : vector<8x1x128xf32> to vector<8x8x128xf32>
    %14 = arith.subf %10, %13 : vector<8x8x128xf32>
    %15 = math.exp %14 : vector<8x8x128xf32>
    %16 = arith.mulf %15, %0 : vector<8x8x128xf32>
    %cst_10 = arith.constant dense<0.000000e+00> : vector<8x128xf32>
    %17 = vector.multi_reduction <add>, %16, %cst_10 [1] : vector<8x8x128xf32> to vector<8x128xf32>
    %cst_11 = arith.constant dense<0.000000e+00> : vector<8x128xf32>
    %18 = vector.multi_reduction <add>, %15, %cst_11 [1] : vector<8x8x128xf32> to vector<8x128xf32>
    %19 = tpu.reciprocal %18 {approx = true} : vector<8x128xf32> -> vector<8x128xf32>
    %20 = arith.mulf %17, %19 : vector<8x128xf32>
    %c0_12 = arith.constant 0 : index
    %c0_13 = arith.constant 0 : index
    %21 = vector.load %arg5[%c0_12, %c0_13] : memref<8x128xf32, #tpu.memory_space<vmem>>, vector<8x128xf32>
    tpu.vector_store %arg5[%c0_12, %c0_13], %20 {strides = array<i32>} : memref<8x128xf32, #tpu.memory_space<vmem>>, vector<8x128xf32>,
    return
  }
  func.func @transform_0(%arg0: i32) -> (i32, i32, i32) {
    %c0_i32 = arith.constant 0 : i32
    %c0_i32_0 = arith.constant 0 : i32
    %c0_i32_1 = arith.constant 0 : i32
    return %arg0, %c0_i32, %c0_i32_0 : i32, i32, i32
  }
  func.func @transform_1(%arg0: i32) -> (i32, i32) {
    %c0_i32 = arith.constant 0 : i32
    %c0_i32_0 = arith.constant 0 : i32
    %c0_i32_1 = arith.constant 0 : i32
    return %c0_i32, %c0_i32_0 : i32, i32
  }
  func.func @transform_2(%arg0: i32) -> (i32, i32) {
    %c0_i32 = arith.constant 0 : i32
    %c0_i32_0 = arith.constant 0 : i32
    %c0_i32_1 = arith.constant 0 : i32
    return %c0_i32, %c0_i32_0 : i32, i32
  }
  func.func @transform_3(%arg0: i32) -> (i32, i32) {
    %c0_i32 = arith.constant 0 : i32
    %c0_i32_0 = arith.constant 0 : i32
    %c0_i32_1 = arith.constant 0 : i32
    return %c0_i32, %c0_i32_0 : i32, i32
  }
  func.func @transform_4(%arg0: i32) -> (i32, i32) {
    %c0_i32 = arith.constant 0 : i32
    %c0_i32_0 = arith.constant 0 : i32
    return %arg0, %c0_i32 : i32, i32
  }
}

</mosaic_0001>

<llo_original>
// kernel: tpu_custom_call.1
$region0: #{tpu_custom_call.1}
  #allocation0 [shape = 'u32[]', space=smem, size = 0x4, offset = 0x4, fixed_abs, tag = 'smem constant byte address 0x4 - core index']
  #allocation1 [shape = 'u32[72,128]{1,0:T(1,128)}', space=vmem, size = 0x9000, scoped, tag = 'internal scratch']
  %s0 = inlined_call_operand.hbm [shape: f32[8,8,128], index: 0, kind: input, shape index: {}]
  %s1 = inlined_call_operand.hbm [shape: f32[128,128], index: 1, kind: input, shape index: {}]
  %s2 = inlined_call_operand.vmem [shape: f32[1,128], index: 2, kind: input, shape index: {}]
  %s3 = inlined_call_operand.hbm [shape: f32[128,128], index: 3, kind: input, shape index: {}]
  %s4 = inlined_call_operand.hbm [shape: f32[8,128], index: 4, kind: output, shape index: {}]
  %s5 = sld [smem:[#allocation0]]
  $region38: #{tpu_custom_call.1} parent=0
    _
  %s7 = ssub.s32 1, %s5
  %s8 = scalar_select 0, %s7, %s5
  $region1: #{tpu_custom_call.1} parent=0
    #allocation2 [shape = 'u8[32768]{0}', space=vmem, size = 0x8000, scoped, tag = 'input window, operand 0, single buffered']
    #allocation3 [shape = 's32[1]{0}', space=sflag, size = 0x4, scoped, tag = 'scoped memory for tpu_custom_call.1']
    #allocation4 [shape = 's32[1]{0}', space=sflag, size = 0x4, scoped, tag = 'scoped memory for tpu_custom_call.1']
    #allocation5 [shape = 'u8[65536]{0}', space=vmem, size = 0x10000, scoped, tag = 'input window, operand 1, single buffered']
    #allocation6 [shape = 's32[1]{0}', space=sflag, size = 0x4, scoped, tag = 'scoped memory for tpu_custom_call.1']
    #allocation7 [shape = 'u8[65536]{0}', space=vmem, size = 0x10000, scoped, tag = 'input window, operand 3, single buffered']
    #allocation8 [shape = 'u8[4096]{0}', space=vmem, size = 0x1000, scoped, tag = 'output window, operand 0, single buffered']
    %9 = vsyncpa [#allocation3], 0
    %10 = vsyncpa [#allocation6], 0
    %11 = vsyncpa [#allocation4], 0
    // Predicated region
    $region2: #{tpu_custom_call.1} parent=1 // pred_check
      _
    $region3: #{tpu_custom_call.1} parent=1 // pred_check_branch
      %13 = sbr.rel (0) target = $region5
    $region4: #{tpu_custom_call.1} parent=1 // pred_region
      %15 = vsyncadd [#allocation3], 0
      %s16 = sshll.u32 %s0, 4
      %s17 = int_to_ptr.hbm [resolvable:$true] %s16
      %s18 = sshll.u32 [#allocation2], 4
      %s19 = int_to_ptr.vmem [resolvable:$true] %s18
      %24 = dma.hbm_to_vmem [thread:$0]  %s17, 1024, %s19, [#allocation3], 128, 128, 8
    $region5: #{tpu_custom_call.1} parent=1 // pred_fallthru
      _
    // Predicated region
    $region6: #{tpu_custom_call.1} parent=1 // pred_check
      _
    $region7: #{tpu_custom_call.1} parent=1 // pred_check_branch
      %26 = sbr.rel (0) target = $region9
    $region8: #{tpu_custom_call.1} parent=1 // pred_region
      %28 = vsyncadd [#allocation6], 0
      %s29 = sshll.u32 %s1, 4
      %s30 = int_to_ptr.hbm [resolvable:$true] %s29
      %s31 = sshll.u32 [#allocation5], 4
      %s32 = int_to_ptr.vmem [resolvable:$true] %s31
      %37 = dma.hbm_to_vmem [thread:$0]  %s30, 2048, %s32, [#allocation6], 128, 128, 8
    $region9: #{tpu_custom_call.1} parent=1 // pred_fallthru
      _
    // Predicated region
    $region10: #{tpu_custom_call.1} parent=1 // pred_check
      _
    $region11: #{tpu_custom_call.1} parent=1 // pred_check_branch
      %39 = sbr.rel (0) target = $region13
    $region12: #{tpu_custom_call.1} parent=1 // pred_region
      _
    $region13: #{tpu_custom_call.1} parent=1 // pred_fallthru
      _
    // Predicated region
    $region14: #{tpu_custom_call.1} parent=1 // pred_check
      _
    $region15: #{tpu_custom_call.1} parent=1 // pred_check_branch
      %41 = sbr.rel (0) target = $region17
    $region16: #{tpu_custom_call.1} parent=1 // pred_region
      %43 = vsyncadd [#allocation6], 0
      %s44 = sshll.u32 %s3, 4
      %s45 = int_to_ptr.hbm [resolvable:$true] %s44
      %s46 = sshll.u32 [#allocation7], 4
      %s47 = int_to_ptr.vmem [resolvable:$true] %s46
      %52 = dma.hbm_to_vmem [thread:$0]  %s45, 2048, %s47, [#allocation6], 128, 128, 8
    $region17: #{tpu_custom_call.1} parent=1 // pred_fallthru
      _
    // Predicated region
    $region18: #{tpu_custom_call.1} parent=1 // pred_check
      _
    $region19: #{tpu_custom_call.1} parent=1 // pred_check_branch
      %54 = sbr.rel (0) target = $region21
    $region20: #{tpu_custom_call.1} parent=1 // pred_region
      %56 = dma.done [#allocation3], 1024
    $region21: #{tpu_custom_call.1} parent=1 // pred_fallthru
      _
    // Predicated region
    $region22: #{tpu_custom_call.1} parent=1 // pred_check
      _
    $region23: #{tpu_custom_call.1} parent=1 // pred_check_branch
      %58 = sbr.rel (0) target = $region25
    $region24: #{tpu_custom_call.1} parent=1 // pred_region
      %60 = dma.done [#allocation6], 2048
    $region25: #{tpu_custom_call.1} parent=1 // pred_fallthru
      _
    // Predicated region
    $region26: #{tpu_custom_call.1} parent=1 // pred_check
      _
    $region27: #{tpu_custom_call.1} parent=1 // pred_check_branch
      %62 = sbr.rel (0) target = $region29
    $region28: #{tpu_custom_call.1} parent=1 // pred_region
      %64 = dma.done [#allocation6], 2048
    $region29: #{tpu_custom_call.1} parent=1 // pred_fallthru
      _
    %v65 = vld [vmem:[#allocation2] sm:$0xff]
    %v66 = vld [vmem:[#allocation2 + $0x8] sm:$0xff]
    %v67 = vld [vmem:[#allocation2 + $0x10] sm:$0xff]
    %v68 = vld [vmem:[#allocation2 + $0x18] sm:$0xff]
    %v69 = vld [vmem:[#allocation2 + $0x20] sm:$0xff]
    %v70 = vld [vmem:[#allocation2 + $0x28] sm:$0xff]
    %v71 = vld [vmem:[#allocation2 + $0x30] sm:$0xff]
    %v72 = vld [vmem:[#allocation2 + $0x38] sm:$0xff]
    %v73 = vld [vmem:[#allocation5] sm:$0xff]
    %v74 = vld [vmem:[#allocation5 + $0x8] sm:$0xff]
    %v75 = vld [vmem:[#allocation5 + $0x10] sm:$0xff]
    %v76 = vld [vmem:[#allocation5 + $0x18] sm:$0xff]
    %v77 = vld [vmem:[#allocation5 + $0x20] sm:$0xff]
    %v78 = vld [vmem:[#allocation5 + $0x28] sm:$0xff]
    %v79 = vld [vmem:[#allocation5 + $0x30] sm:$0xff]
    %v80 = vld [vmem:[#allocation5 + $0x38] sm:$0xff]
    %v81 = vld [vmem:[#allocation5 + $0x40] sm:$0xff]
    %v82 = vld [vmem:[#allocation5 + $0x48] sm:$0xff]
    %v83 = vld [vmem:[#allocation5 + $0x50] sm:$0xff]
    %v84 = vld [vmem:[#allocation5 + $0x58] sm:$0xff]
    %v85 = vld [vmem:[#allocation5 + $0x60] sm:$0xff]
    %v86 = vld [vmem:[#allocation5 + $0x68] sm:$0xff]
    %v87 = vld [vmem:[#allocation5 + $0x70] sm:$0xff]
    %v88 = vld [vmem:[#allocation5 + $0x78] sm:$0xff]
    %v89 = vld [vmem:[%s2] sm:$0x1]
    %v91 = vperm.slane %v89, 0
    %93 = vmatpush.msra.mxu0 %v88
    %94 = vmatpush.msra.mxu0 %v87
    %95 = vmatpush.msra.mxu0 %v86
    %96 = vmatpush.msra.mxu0 %v85
    %97 = vmatpush.msra.mxu0 %v84
    %98 = vmatpush.msra.mxu0 %v83
    %99 = vmatpush.msra.mxu0 %v82
    %100 = vmatpush.msra.mxu0 %v81
    %101 = vmatpush.msra.mxu0 %v80
    %102 = vmatpush.msra.mxu0 %v79
    %103 = vmatpush.msra.mxu0 %v78
    %104 = vmatpush.msra.mxu0 %v77
    %105 = vmatpush.msra.mxu0 %v76
    %106 = vmatpush.msra.mxu0 %v75
    %107 = vmatpush.msra.mxu0 %v74
    %108 = vmatpush.msra.mxu0 %v73
    %109 = vmatmul.f32.gmra.mxu0 %v65
    %v110 = vpop.f32.mrf.mxu0
    %v111 = vadd.f32 %v91, %v110
    %112 = vmatmul.f32.gmra.mxu0 %v66
    %v113 = vpop.f32.mrf.mxu0
    %v114 = vadd.f32 %v91, %v113
    %115 = vmatmul.f32.gmra.mxu0 %v67
    %v116 = vpop.f32.mrf.mxu0
    %v117 = vadd.f32 %v91, %v116
    %118 = vmatmul.f32.gmra.mxu0 %v68
    %v119 = vpop.f32.mrf.mxu0
    %v120 = vadd.f32 %v91, %v119
    %121 = vmatmul.f32.gmra.mxu0 %v69
    %v122 = vpop.f32.mrf.mxu0
    %v123 = vadd.f32 %v91, %v122
    %124 = vmatmul.f32.gmra.mxu0 %v70
    %v125 = vpop.f32.mrf.mxu0
    %v126 = vadd.f32 %v91, %v125
    %127 = vmatmul.f32.gmra.mxu0 %v71
    %v128 = vpop.f32.mrf.mxu0
    %v129 = vadd.f32 %v91, %v128
    %130 = vmatmul.f32.gmra.mxu0 %v72
    %v131 = vpop.f32.mrf.mxu0
    %v132 = vadd.f32 %v91, %v131
    %133 = vdwg.mxu0
    %v134 = vtanh.pop %v111
    %v135 = vtanh.pop %v114
    %v136 = vtanh.pop %v117
    %v137 = vtanh.pop %v120
    %v138 = vtanh.pop %v123
    %v139 = vtanh.pop %v126
    %v140 = vtanh.pop %v129
    %v141 = vtanh.pop %v132
    %v142 = vld [vmem:[#allocation7] sm:$0xff]
    %v143 = vld [vmem:[#allocation7 + $0x8] sm:$0xff]
    %v144 = vld [vmem:[#allocation7 + $0x10] sm:$0xff]
    %v145 = vld [vmem:[#allocation7 + $0x18] sm:$0xff]
    %v146 = vld [vmem:[#allocation7 + $0x20] sm:$0xff]
    %v147 = vld [vmem:[#allocation7 + $0x28] sm:$0xff]
    %v148 = vld [vmem:[#allocation7 + $0x30] sm:$0xff]
    %v149 = vld [vmem:[#allocation7 + $0x38] sm:$0xff]
    %v150 = vld [vmem:[#allocation7 + $0x40] sm:$0xff]
    %v151 = vld [vmem:[#allocation7 + $0x48] sm:$0xff]
    %v152 = vld [vmem:[#allocation7 + $0x50] sm:$0xff]
    %v153 = vld [vmem:[#allocation7 + $0x58] sm:$0xff]
    %v154 = vld [vmem:[#allocation7 + $0x60] sm:$0xff]
    %v155 = vld [vmem:[#allocation7 + $0x68] sm:$0xff]
    %v156 = vld [vmem:[#allocation7 + $0x70] sm:$0xff]
    %v157 = vld [vmem:[#allocation7 + $0x78] sm:$0xff]
    %158 = vmatpush.msra.mxu0 %v157
    %159 = vmatpush.msra.mxu0 %v156
    %160 = vmatpush.msra.mxu0 %v155
    %161 = vmatpush.msra.mxu0 %v154
    %162 = vmatpush.msra.mxu0 %v153
    %163 = vmatpush.msra.mxu0 %v152
    %164 = vmatpush.msra.mxu0 %v151
    %165 = vmatpush.msra.mxu0 %v150
    %166 = vmatpush.msra.mxu0 %v149
    %167 = vmatpush.msra.mxu0 %v148
    %168 = vmatpush.msra.mxu0 %v147
    %169 = vmatpush.msra.mxu0 %v146
    %170 = vmatpush.msra.mxu0 %v145
    %171 = vmatpush.msra.mxu0 %v144
    %172 = vmatpush.msra.mxu0 %v143
    %173 = vmatpush.msra.mxu0 %v142
    %174 = vmatmul.f32.gmra.mxu0 %v134
    %v175 = vpop.f32.mrf.mxu0
    %v176 = vadd.f32 0.0, %v175
    %177 = vmatmul.f32.gmra.mxu0 %v135
    %v178 = vpop.f32.mrf.mxu0
    %v179 = vadd.f32 0.0, %v178
    %180 = vmatmul.f32.gmra.mxu0 %v136
    %v181 = vpop.f32.mrf.mxu0
    %v182 = vadd.f32 0.0, %v181
    %183 = vmatmul.f32.gmra.mxu0 %v137
    %v184 = vpop.f32.mrf.mxu0
    %v185 = vadd.f32 0.0, %v184
    %186 = vmatmul.f32.gmra.mxu0 %v138
    %v187 = vpop.f32.mrf.mxu0
    %v188 = vadd.f32 0.0, %v187
    %189 = vmatmul.f32.gmra.mxu0 %v139
    %v190 = vpop.f32.mrf.mxu0
    %v191 = vadd.f32 0.0, %v190
    %192 = vmatmul.f32.gmra.mxu0 %v140
    %v193 = vpop.f32.mrf.mxu0
    %v194 = vadd.f32 0.0, %v193
    %195 = vmatmul.f32.gmra.mxu0 %v141
    %v196 = vpop.f32.mrf.mxu0
    %v197 = vadd.f32 0.0, %v196
    %198 = vdwg.mxu0
    %v199 = vrot.slane %v176, 4
    %v200 = vmax.f32 %v176, %v199
    %v201 = vrot.slane %v200, 2
    %v202 = vmax.f32 %v200, %v201
    %v203 = vrot.slane %v202, 1
    %v204 = vmax.f32 %v202, %v203
    %v205 = vrot.slane %v179, 4
    %v206 = vmax.f32 %v179, %v205
    %v207 = vrot.slane %v206, 2
    %v208 = vmax.f32 %v206, %v207
    %v209 = vrot.slane %v208, 1
    %v210 = vmax.f32 %v208, %v209
    %v211 = vrot.slane %v182, 4
    %v212 = vmax.f32 %v182, %v211
    %v213 = vrot.slane %v212, 2
    %v214 = vmax.f32 %v212, %v213
    %v215 = vrot.slane %v214, 1
    %v216 = vmax.f32 %v214, %v215
    %v217 = vrot.slane %v185, 4
    %v218 = vmax.f32 %v185, %v217
    %v219 = vrot.slane %v218, 2
    %v220 = vmax.f32 %v218, %v219
    %v221 = vrot.slane %v220, 1
    %v222 = vmax.f32 %v220, %v221
    %v223 = vrot.slane %v188, 4
    %v224 = vmax.f32 %v188, %v223
    %v225 = vrot.slane %v224, 2
    %v226 = vmax.f32 %v224, %v225
    %v227 = vrot.slane %v226, 1
    %v228 = vmax.f32 %v226, %v227
    %v229 = vrot.slane %v191, 4
    %v230 = vmax.f32 %v191, %v229
    %v231 = vrot.slane %v230, 2
    %v232 = vmax.f32 %v230, %v231
    %v233 = vrot.slane %v232, 1
    %v234 = vmax.f32 %v232, %v233
    %v235 = vrot.slane %v194, 4
    %v236 = vmax.f32 %v194, %v235
    %v237 = vrot.slane %v236, 2
    %v238 = vmax.f32 %v236, %v237
    %v239 = vrot.slane %v238, 1
    %v240 = vmax.f32 %v238, %v239
    %v241 = vrot.slane %v197, 4
    %v242 = vmax.f32 %v197, %v241
    %v243 = vrot.slane %v242, 2
    %v244 = vmax.f32 %v242, %v243
    %v245 = vrot.slane %v244, 1
    %v246 = vmax.f32 %v244, %v245
    %v247 = vsub.f32 %v176, %v204
    %v248 = vsub.f32 %v179, %v210
    %v249 = vsub.f32 %v182, %v216
    %v250 = vsub.f32 %v185, %v222
    %v251 = vsub.f32 %v188, %v228
    %v252 = vsub.f32 %v191, %v234
    %v253 = vsub.f32 %v194, %v240
    %v254 = vsub.f32 %v197, %v246
    %v255 = vmul.f32 %v247, 1.442695
    %v256 = vpow.pop %v255
    %v257 = vmul.f32 %v248, 1.442695
    %v258 = vpow.pop %v257
    %v259 = vmul.f32 %v249, 1.442695
    %v260 = vpow.pop %v259
    %v261 = vmul.f32 %v250, 1.442695
    %v262 = vpow.pop %v261
    %v263 = vmul.f32 %v251, 1.442695
    %v264 = vpow.pop %v263
    %v265 = vmul.f32 %v252, 1.442695
    %v266 = vpow.pop %v265
    %v267 = vmul.f32 %v253, 1.442695
    %v268 = vpow.pop %v267
    %v269 = vmul.f32 %v254, 1.442695
    %v270 = vpow.pop %v269
    %v271 = vmul.f32 %v256, %v65
    %v272 = vmul.f32 %v258, %v66
    %v273 = vmul.f32 %v260, %v67
    %v274 = vmul.f32 %v262, %v68
    %v275 = vmul.f32 %v264, %v69
    %v276 = vmul.f32 %v266, %v70
    %v277 = vmul.f32 %v268, %v71
    %v278 = vmul.f32 %v270, %v72
    %v279 = vrot.slane %v271, 4
    %v280 = vadd.f32 %v271, %v279
    %v281 = vrot.slane %v280, 2
    %v282 = vadd.f32 %v280, %v281
    %v283 = vrot.slane %v282, 1
    %v284 = vadd.f32 %v282, %v283
    %v285 = vrot.slane %v272, 4
    %v286 = vadd.f32 %v272, %v285
    %v287 = vrot.slane %v286, 2
    %v288 = vadd.f32 %v286, %v287
    %v289 = vrot.slane %v288, 1
    %v290 = vadd.f32 %v288, %v289
    %v291 = vrot.slane %v273, 4
    %v292 = vadd.f32 %v273, %v291
    %v293 = vrot.slane %v292, 2
    %v294 = vadd.f32 %v292, %v293
    %v295 = vrot.slane %v294, 1
    %v296 = vadd.f32 %v294, %v295
    %v297 = vrot.slane %v274, 4
    %v298 = vadd.f32 %v274, %v297
    %v299 = vrot.slane %v298, 2
    %v300 = vadd.f32 %v298, %v299
    %v301 = vrot.slane %v300, 1
    %v302 = vadd.f32 %v300, %v301
    %v303 = vrot.slane %v275, 4
    %v304 = vadd.f32 %v275, %v303
    %v305 = vrot.slane %v304, 2
    %v306 = vadd.f32 %v304, %v305
    %v307 = vrot.slane %v306, 1
    %v308 = vadd.f32 %v306, %v307
    %v309 = vrot.slane %v276, 4
    %v310 = vadd.f32 %v276, %v309
    %v311 = vrot.slane %v310, 2
    %v312 = vadd.f32 %v310, %v311
    %v313 = vrot.slane %v312, 1
    %v314 = vadd.f32 %v312, %v313
    %v315 = vrot.slane %v277, 4
    %v316 = vadd.f32 %v277, %v315
    %v317 = vrot.slane %v316, 2
    %v318 = vadd.f32 %v316, %v317
    %v319 = vrot.slane %v318, 1
    %v320 = vadd.f32 %v318, %v319
    %v321 = vrot.slane %v278, 4
    %v322 = vadd.f32 %v278, %v321
    %v323 = vrot.slane %v322, 2
    %v324 = vadd.f32 %v322, %v323
    %v325 = vrot.slane %v324, 1
    %v326 = vadd.f32 %v324, %v325
    %v327 = vrot.slane %v256, 4
    %v328 = vadd.f32 %v256, %v327
    %v329 = vrot.slane %v328, 2
    %v330 = vadd.f32 %v328, %v329
    %v331 = vrot.slane %v330, 1
    %v332 = vadd.f32 %v330, %v331
    %v333 = vrot.slane %v258, 4
    %v334 = vadd.f32 %v258, %v333
    %v335 = vrot.slane %v334, 2
    %v336 = vadd.f32 %v334, %v335
    %v337 = vrot.slane %v336, 1
    %v338 = vadd.f32 %v336, %v337
    %v339 = vrot.slane %v260, 4
    %v340 = vadd.f32 %v260, %v339
    %v341 = vrot.slane %v340, 2
    %v342 = vadd.f32 %v340, %v341
    %v343 = vrot.slane %v342, 1
    %v344 = vadd.f32 %v342, %v343
    %v345 = vrot.slane %v262, 4
    %v346 = vadd.f32 %v262, %v345
    %v347 = vrot.slane %v346, 2
    %v348 = vadd.f32 %v346, %v347
    %v349 = vrot.slane %v348, 1
    %v350 = vadd.f32 %v348, %v349
    %v351 = vrot.slane %v264, 4
    %v352 = vadd.f32 %v264, %v351
    %v353 = vrot.slane %v352, 2
    %v354 = vadd.f32 %v352, %v353
    %v355 = vrot.slane %v354, 1
    %v356 = vadd.f32 %v354, %v355
    %v357 = vrot.slane %v266, 4
    %v358 = vadd.f32 %v266, %v357
    %v359 = vrot.slane %v358, 2
    %v360 = vadd.f32 %v358, %v359
    %v361 = vrot.slane %v360, 1
    %v362 = vadd.f32 %v360, %v361
    %v363 = vrot.slane %v268, 4
    %v364 = vadd.f32 %v268, %v363
    %v365 = vrot.slane %v364, 2
    %v366 = vadd.f32 %v364, %v365
    %v367 = vrot.slane %v366, 1
    %v368 = vadd.f32 %v366, %v367
    %v369 = vrot.slane %v270, 4
    %v370 = vadd.f32 %v270, %v369
    %v371 = vrot.slane %v370, 2
    %v372 = vadd.f32 %v370, %v371
    %v373 = vrot.slane %v372, 1
    %v374 = vadd.f32 %v372, %v373
    %v375 = vrcp.pop %v332
    %v376 = vrcp.pop %v338
    %v377 = vrcp.pop %v344
    %v378 = vrcp.pop %v350
    %v379 = vrcp.pop %v356
    %v380 = vrcp.pop %v362
    %v381 = vrcp.pop %v368
    %v382 = vrcp.pop %v374
    %v383 = vmul.f32 %v284, %v375
    %v384 = vmul.f32 %v290, %v376
    %v385 = vmul.f32 %v296, %v377
    %v386 = vmul.f32 %v302, %v378
    %v387 = vmul.f32 %v308, %v379
    %v388 = vmul.f32 %v314, %v380
    %v389 = vmul.f32 %v320, %v381
    %v390 = vmul.f32 %v326, %v382
    %vm399 = vcmask 1041409
    %v400 = vsel %vm399, %v384, %v383
    %vm401 = vcmask 1042434
    %v402 = vsel %vm401, %v385, %v400
    %vm403 = vcmask 1043459
    %v404 = vsel %vm403, %v386, %v402
    %vm405 = vcmask 1044484
    %v406 = vsel %vm405, %v387, %v404
    %vm407 = vcmask 1045509
    %v408 = vsel %vm407, %v388, %v406
    %vm409 = vcmask 1046534
    %v410 = vsel %vm409, %v389, %v408
    %vm411 = vcmask 1047559
    %v412 = vsel %vm411, %v390, %v410
    %414 = vst [vmem:[#allocation8] sm:$0xff] %v412
    // Predicated region
    $region30: #{tpu_custom_call.1} parent=1 // pred_check
      _
    $region31: #{tpu_custom_call.1} parent=1 // pred_check_branch
      %416 = sbr.rel (0) target = $region33
    $region32: #{tpu_custom_call.1} parent=1 // pred_region
      %418 = vsyncadd [#allocation4], 0
      %s420 = sshll.u32 [#allocation8], 4
      %s421 = int_to_ptr.vmem [resolvable:$true] %s420
      %s422 = sshll.u32 %s4, 4
      %s423 = int_to_ptr.hbm [resolvable:$true] %s422
      %425 = dma.vmem_to_hbm [thread:$0]  %s421, 128, %s423, [#allocation4]
    $region33: #{tpu_custom_call.1} parent=1 // pred_fallthru
      _
    // Predicated region
    $region34: #{tpu_custom_call.1} parent=1 // pred_check
      _
    $region35: #{tpu_custom_call.1} parent=1 // pred_check_branch
      %427 = sbr.rel (0) target = $region37
    $region36: #{tpu_custom_call.1} parent=1 // pred_region
      %429 = dma.done [#allocation4], 128
    $region37: #{tpu_custom_call.1} parent=1 // pred_fallthru
      _
    %430 = vsyncpa [#allocation3], 1
    %431 = vsyncpa [#allocation6], 1
    %432 = vsyncpa [#allocation4], 1

</llo_original>
